<compile_context>
chip_gen: v7x
topology: tpu7x:2x2x1
jax: 0.10.0
libtpu: 0.0.40
codegen_flags: <defaults>
</compile_context>

<pallas_src>
import functools

import jax
import jax.numpy as jnp
from jax.experimental import pallas as pl
from jax.experimental.pallas import tpu as pltpu


def _round_up(n, m):
    return ((n + m - 1) // m) * m


def _mlp_kernel(x_ref, w1_ref, b1_ref, w2_ref, b2_ref,
                w3_ref, b3_ref, wf_ref, bf_ref, o_ref):
    # x tile: (13, TILE_B) -- batch on the lane axis.
    x = x_ref[...]

    # (26,13) @ (13,T) -> (26,T); bias (26,1) broadcasts over lanes.
    h = jnp.dot(w1_ref[...], x, preferred_element_type=jnp.float32) + b1_ref[...]
    h = jax.nn.sigmoid(h)

    h = jnp.dot(w2_ref[...], h, preferred_element_type=jnp.float32) + b2_ref[...]
    h = jax.nn.sigmoid(h)

    h = jnp.dot(w3_ref[...], h, preferred_element_type=jnp.float32) + b3_ref[...]
    h = jax.nn.sigmoid(h)

    # (1,26) @ (26,T) -> (1,T): lane-dense output row.
    y = jnp.dot(wf_ref[...], h, preferred_element_type=jnp.float32) + bf_ref[...]
    o_ref[...] = y.astype(o_ref.dtype)


@functools.partial(jax.jit, static_argnames=("tile_b",))
def regression_forward(x, params, *, tile_b=None):
    """x: (B, 13) float32 -> (B,) float32.

    params are in PyTorch layout: weights (out, in), biases (out, 1).
    """
    w1, b1, w2, b2, w3, b3, wf, bf = params
    B, F = x.shape

    if tile_b is None:
        # Lane-dense tiles; grow up to 1024 rows/step for large batches.
        tile_b = min(1024, _round_up(B, 128))
    B_pad = _round_up(B, tile_b)

    # Transpose so batch is the lane (last) axis; zero-pad the remainder tile.
    xT = jnp.pad(x.T, ((0, 0), (0, B_pad - B)))      # (13, B_pad)

    grid = (B_pad // tile_b,)

    resident = lambda i: (0, 0)   # weights / biases stay VMEM-resident

    out = pl.pallas_call(
        _mlp_kernel,
        out_shape=jax.ShapeDtypeStruct((1, B_pad), jnp.float32),
        grid=grid,
        in_specs=[
            pl.BlockSpec((F, tile_b), lambda i: (0, i)),   # x tile
            pl.BlockSpec((26, 13), resident),              # w1
            pl.BlockSpec((26, 1), resident),               # b1
            pl.BlockSpec((26, 26), resident),              # w2
            pl.BlockSpec((26, 1), resident),               # b2
            pl.BlockSpec((26, 26), resident),              # w3
            pl.BlockSpec((26, 1), resident),               # b3
            pl.BlockSpec((1, 26), resident),               # wf
            pl.BlockSpec((1, 1), resident),                # bf
        ],
        out_specs=pl.BlockSpec((1, tile_b), lambda i: (0, i)),
        compiler_params=pltpu.CompilerParams(
            dimension_semantics=("parallel",),
        ),
    )(xT, w1, b1, w2, b2, w3, b3, wf, bf)

    # Drop batch padding and squeeze(-1) equivalent (output is already a row).
    return out[0, :B]


def init_params(key):
    """Deterministic parameter init, PyTorch layout: W (out,in), b (out,1)."""
    keys = jax.random.split(key, 8)

    def linear(kw, kb, fan_in, fan_out):
        bound = 1.0 / jnp.sqrt(jnp.float32(fan_in))
        w = jax.random.uniform(kw, (fan_out, fan_in), jnp.float32, -bound, bound)
        b = jax.random.uniform(kb, (fan_out, 1), jnp.float32, -bound, bound)
        return w, b

    w1, b1 = linear(keys[0], keys[1], 13, 26)
    w2, b2 = linear(keys[2], keys[3], 26, 26)
    w3, b3 = linear(keys[4], keys[5], 26, 26)
    wf, bf = linear(keys[6], keys[7], 26, 1)
    return (w1, b1, w2, b2, w3, b3, wf, bf)


if __name__ == "__main__":
    key = jax.random.PRNGKey(0)
    k_params, k_x = jax.random.split(key)

    params = init_params(k_params)
    x = jax.random.normal(k_x, (8, 13), dtype=jnp.float32)  # batch=8, features=13
    # NOTE: at B=8 this is pure kernel-launch overhead; the Pallas path pays
    # off only at large batch (it tiles/pipelines the batch axis then).

    y = regression_forward(x, params)
    y = jax.block_until_ready(y)

    # Pure-JAX reference of the same math (PyTorch-layout params).
    def ref(xx, pp):
        w1, b1, w2, b2, w3, b3, wf, bf = pp
        h = jax.nn.sigmoid(xx @ w1.T + b1.T)
        h = jax.nn.sigmoid(h @ w2.T + b2.T)
        h = jax.nn.sigmoid(h @ w3.T + b3.T)
        return jnp.squeeze(h @ wf.T + bf.T, axis=-1)

    y_ref = ref(x, params)
    assert y.shape == (8,), y.shape
    assert jnp.allclose(y, y_ref, atol=1e-5, rtol=1e-5)

    print("KERNEL_OK")
</pallas_src>

<mosaic_0001>
module attributes {stable_mosaic.version = 11 : i64} {
  func.func @_mlp_kernel(%arg0: i32, %arg1: memref<13x128xf32, #tpu.memory_space<vmem>>, %arg2: memref<26x13xf32, #tpu.memory_space<vmem>>, %arg3: memref<26x1xf32, #tpu.memory_space<vmem>>, %arg4: memref<26x26xf32, #tpu.memory_space<vmem>>, %arg5: memref<26x1xf32, #tpu.memory_space<vmem>>, %arg6: memref<26x26xf32, #tpu.memory_space<vmem>>, %arg7: memref<26x1xf32, #tpu.memory_space<vmem>>, %arg8: memref<1x26xf32, #tpu.memory_space<vmem>>, %arg9: memref<1x1xf32, #tpu.memory_space<vmem>>, %arg10: memref<1x128xf32, #tpu.memory_space<vmem>>) attributes {dimension_semantics = [#tpu.dimension_semantics<parallel>], iteration_bounds = array<i64: 1>, scalar_prefetch = 0 : i64, scratch_operands = 0 : i64, tpu.core_type = #tpu.core_type<tc>, window_params = [{transform_indices = @transform_0, window_bounds = array<i64: 13, 128>}, {pipeline_mode = #tpu.pipeline_mode<synchronous>, transform_indices = @transform_1, window_bounds = array<i64: 26, 13>}, {pipeline_mode = #tpu.pipeline_mode<synchronous>, transform_indices = @transform_2, window_bounds = array<i64: 26, 1>}, {pipeline_mode = #tpu.pipeline_mode<synchronous>, transform_indices = @transform_3, window_bounds = array<i64: 26, 26>}, {pipeline_mode = #tpu.pipeline_mode<synchronous>, transform_indices = @transform_4, window_bounds = array<i64: 26, 1>}, {pipeline_mode = #tpu.pipeline_mode<synchronous>, transform_indices = @transform_5, window_bounds = array<i64: 26, 26>}, {pipeline_mode = #tpu.pipeline_mode<synchronous>, transform_indices = @transform_6, window_bounds = array<i64: 26, 1>}, {pipeline_mode = #tpu.pipeline_mode<synchronous>, transform_indices = @transform_7, window_bounds = array<i64: 1, 26>}, {pipeline_mode = #tpu.pipeline_mode<synchronous>, transform_indices = @transform_8, window_bounds = array<i64: 1, 1>}, {transform_indices = @transform_9, window_bounds = array<i64: 1, 128>}]} {
    %c0 = arith.constant 0 : index
    %c0_0 = arith.constant 0 : index
    %0 = vector.load %arg1[%c0, %c0_0] : memref<13x128xf32, #tpu.memory_space<vmem>>, vector<13x128xf32>
    %c0_1 = arith.constant 0 : index
    %c0_2 = arith.constant 0 : index
    %1 = vector.load %arg2[%c0_1, %c0_2] : memref<26x13xf32, #tpu.memory_space<vmem>>, vector<26x13xf32>
    %cst = arith.constant dense<0.000000e+00> : vector<26x128xf32>
    %2 = tpu.matmul %1, %0, %cst {dimension_numbers = #tpu.dot_dimension_numbers<[1], [0], [0], [1], [0, 0, 1, 1], [], []>} : vector<26x13xf32>, vector<13x128xf32>, vector<26x128xf32> -> vector<26x128xf32>
    %c0_3 = arith.constant 0 : index
    %c0_4 = arith.constant 0 : index
    %3 = vector.load %arg3[%c0_3, %c0_4] : memref<26x1xf32, #tpu.memory_space<vmem>>, vector<26x1xf32>
    %4 = vector.broadcast %3 : vector<26x1xf32> to vector<26x128xf32>
    %5 = arith.addf %2, %4 : vector<26x128xf32>
    %6 = arith.negf %5 : vector<26x128xf32>
    %7 = math.exp %6 : vector<26x128xf32>
    %cst_5 = arith.constant 1.000000e+00 : f32
    %8 = vector.broadcast %cst_5 : f32 to vector<26x128xf32>
    %9 = arith.addf %8, %7 : vector<26x128xf32>
    %10 = arith.divf %8, %9 : vector<26x128xf32>
    %c0_6 = arith.constant 0 : index
    %c0_7 = arith.constant 0 : index
    %11 = vector.load %arg4[%c0_6, %c0_7] : memref<26x26xf32, #tpu.memory_space<vmem>>, vector<26x26xf32>
    %cst_8 = arith.constant dense<0.000000e+00> : vector<26x128xf32>
    %12 = tpu.matmul %11, %10, %cst_8 {dimension_numbers = #tpu.dot_dimension_numbers<[1], [0], [0], [1], [0, 0, 1, 1], [], []>} : vector<26x26xf32>, vector<26x128xf32>, vector<26x128xf32> -> vector<26x128xf32>
    %c0_9 = arith.constant 0 : index
    %c0_10 = arith.constant 0 : index
    %13 = vector.load %arg5[%c0_9, %c0_10] : memref<26x1xf32, #tpu.memory_space<vmem>>, vector<26x1xf32>
    %14 = vector.broadcast %13 : vector<26x1xf32> to vector<26x128xf32>
    %15 = arith.addf %12, %14 : vector<26x128xf32>
    %16 = arith.negf %15 : vector<26x128xf32>
    %17 = math.exp %16 : vector<26x128xf32>
    %cst_11 = arith.constant 1.000000e+00 : f32
    %18 = vector.broadcast %cst_11 : f32 to vector<26x128xf32>
    %19 = arith.addf %18, %17 : vector<26x128xf32>
    %20 = arith.divf %18, %19 : vector<26x128xf32>
    %c0_12 = arith.constant 0 : index
    %c0_13 = arith.constant 0 : index
    %21 = vector.load %arg6[%c0_12, %c0_13] : memref<26x26xf32, #tpu.memory_space<vmem>>, vector<26x26xf32>
    %cst_14 = arith.constant dense<0.000000e+00> : vector<26x128xf32>
    %22 = tpu.matmul %21, %20, %cst_14 {dimension_numbers = #tpu.dot_dimension_numbers<[1], [0], [0], [1], [0, 0, 1, 1], [], []>} : vector<26x26xf32>, vector<26x128xf32>, vector<26x128xf32> -> vector<26x128xf32>
    %c0_15 = arith.constant 0 : index
    %c0_16 = arith.constant 0 : index
    %23 = vector.load %arg7[%c0_15, %c0_16] : memref<26x1xf32, #tpu.memory_space<vmem>>, vector<26x1xf32>
    %24 = vector.broadcast %23 : vector<26x1xf32> to vector<26x128xf32>
    %25 = arith.addf %22, %24 : vector<26x128xf32>
    %26 = arith.negf %25 : vector<26x128xf32>
    %27 = math.exp %26 : vector<26x128xf32>
    %cst_17 = arith.constant 1.000000e+00 : f32
    %28 = vector.broadcast %cst_17 : f32 to vector<26x128xf32>
    %29 = arith.addf %28, %27 : vector<26x128xf32>
    %30 = arith.divf %28, %29 : vector<26x128xf32>
    %c0_18 = arith.constant 0 : index
    %c0_19 = arith.constant 0 : index
    %31 = vector.load %arg8[%c0_18, %c0_19] : memref<1x26xf32, #tpu.memory_space<vmem>>, vector<1x26xf32>
    %cst_20 = arith.constant dense<0.000000e+00> : vector<1x128xf32>
    %32 = tpu.matmul %31, %30, %cst_20 {dimension_numbers = #tpu.dot_dimension_numbers<[1], [0], [0], [1], [0, 0, 1, 1], [], []>} : vector<1x26xf32>, vector<26x128xf32>, vector<1x128xf32> -> vector<1x128xf32>
    %c0_21 = arith.constant 0 : index
    %c0_22 = arith.constant 0 : index
    %33 = vector.load %arg9[%c0_21, %c0_22] : memref<1x1xf32, #tpu.memory_space<vmem>>, vector<1x1xf32>
    %34 = vector.broadcast %33 : vector<1x1xf32> to vector<1x128xf32>
    %35 = arith.addf %32, %34 : vector<1x128xf32>
    %c0_23 = arith.constant 0 : index
    %c0_24 = arith.constant 0 : index
    %36 = vector.load %arg10[%c0_23, %c0_24] : memref<1x128xf32, #tpu.memory_space<vmem>>, vector<1x128xf32>
    tpu.vector_store %arg10[%c0_23, %c0_24], %35 {strides = array<i32>} : memref<1x128xf32, #tpu.memory_space<vmem>>, vector<1x128xf32>,
    return
  }
  func.func @transform_0(%arg0: i32) -> (i32, i32) {
    %c0_i32 = arith.constant 0 : i32
    %c0_i32_0 = arith.constant 0 : i32
    return %c0_i32, %arg0 : i32, i32
  }
  func.func @transform_1(%arg0: i32) -> (i32, i32) {
    %c0_i32 = arith.constant 0 : i32
    %c0_i32_0 = arith.constant 0 : i32
    %c0_i32_1 = arith.constant 0 : i32
    return %c0_i32, %c0_i32_0 : i32, i32
  }
  func.func @transform_2(%arg0: i32) -> (i32, i32) {
    %c0_i32 = arith.constant 0 : i32
    %c0_i32_0 = arith.constant 0 : i32
    %c0_i32_1 = arith.constant 0 : i32
    return %c0_i32, %c0_i32_0 : i32, i32
  }
  func.func @transform_3(%arg0: i32) -> (i32, i32) {
    %c0_i32 = arith.constant 0 : i32
    %c0_i32_0 = arith.constant 0 : i32
    %c0_i32_1 = arith.constant 0 : i32
    return %c0_i32, %c0_i32_0 : i32, i32
  }
  func.func @transform_4(%arg0: i32) -> (i32, i32) {
    %c0_i32 = arith.constant 0 : i32
    %c0_i32_0 = arith.constant 0 : i32
    %c0_i32_1 = arith.constant 0 : i32
    return %c0_i32, %c0_i32_0 : i32, i32
  }
  func.func @transform_5(%arg0: i32) -> (i32, i32) {
    %c0_i32 = arith.constant 0 : i32
    %c0_i32_0 = arith.constant 0 : i32
    %c0_i32_1 = arith.constant 0 : i32
    return %c0_i32, %c0_i32_0 : i32, i32
  }
  func.func @transform_6(%arg0: i32) -> (i32, i32) {
    %c0_i32 = arith.constant 0 : i32
    %c0_i32_0 = arith.constant 0 : i32
    %c0_i32_1 = arith.constant 0 : i32
    return %c0_i32, %c0_i32_0 : i32, i32
  }
  func.func @transform_7(%arg0: i32) -> (i32, i32) {
    %c0_i32 = arith.constant 0 : i32
    %c0_i32_0 = arith.constant 0 : i32
    %c0_i32_1 = arith.constant 0 : i32
    return %c0_i32, %c0_i32_0 : i32, i32
  }
  func.func @transform_8(%arg0: i32) -> (i32, i32) {
    %c0_i32 = arith.constant 0 : i32
    %c0_i32_0 = arith.constant 0 : i32
    %c0_i32_1 = arith.constant 0 : i32
    return %c0_i32, %c0_i32_0 : i32, i32
  }
  func.func @transform_9(%arg0: i32) -> (i32, i32) {
    %c0_i32 = arith.constant 0 : i32
    %c0_i32_0 = arith.constant 0 : i32
    return %c0_i32, %arg0 : i32, i32
  }
}

</mosaic_0001>

<llo_original>
// kernel: regression_forward.1
$region0: #{regression_forward.1}
  #allocation0 [shape = 'u32[]', space=smem, size = 0x4, offset = 0x4, fixed_abs, tag = 'smem constant byte address 0x4 - core index']
  #allocation1 [shape = 'u32[144,128]{1,0:T(1,128)}', space=vmem, size = 0x12000, scoped, tag = 'internal scratch']
  #allocation2 [shape = 'f32[1,1]{1,0:T(1,128)S(1)}', space=vmem, size = 0x200, scoped, tag = 'scoped memory for regression_forward.1']
  %s0 = inlined_call_operand.vmem [shape: f32[13,128], index: 0, kind: input, shape index: {}]
  %s1 = inlined_call_operand.vmem [shape: f32[26,13], index: 1, kind: input, shape index: {}]
  %s2 = inlined_call_operand.vmem [shape: f32[26,1], index: 2, kind: input, shape index: {}]
  %s3 = inlined_call_operand.vmem [shape: f32[26,26], index: 3, kind: input, shape index: {}]
  %s4 = inlined_call_operand.vmem [shape: f32[26,1], index: 4, kind: input, shape index: {}]
  %s5 = inlined_call_operand.vmem [shape: f32[26,26], index: 5, kind: input, shape index: {}]
  %s6 = inlined_call_operand.vmem [shape: f32[26,1], index: 6, kind: input, shape index: {}]
  %s7 = inlined_call_operand.vmem [shape: f32[1,26], index: 7, kind: input, shape index: {}]
  %s8 = inlined_call_operand.<no memory space> [shape: f32[1,1], index: 8, kind: input, shape index: {}]
  %s9 = inlined_call_operand.vmem [shape: f32[1,128], index: 9, kind: output, shape index: {}]
  %s10 = sld [smem:[#allocation0]]
  $region46: #{regression_forward.1} parent=0
    _
  %s12 = ssub.s32 1, %s10
  %s13 = scalar_select 0, %s12, %s10
  %v14 = vstv %s8
  %15 = vst [vmem:[#allocation2] sm:$0x1] %v14
  // Predicated region
  $region2: #{regression_forward.1} parent=0 // pred_check
    _
  $region3: #{regression_forward.1} parent=0 // pred_check_branch
    %17 = sbr.rel (0) target = $region5
  $region4: #{regression_forward.1} parent=0 // pred_region
    _
  $region5: #{regression_forward.1} parent=0 // pred_fallthru
    _
  // Predicated region
  $region6: #{regression_forward.1} parent=0 // pred_check
    _
  $region7: #{regression_forward.1} parent=0 // pred_check_branch
    %19 = sbr.rel (0) target = $region9
  $region8: #{regression_forward.1} parent=0 // pred_region
    _
  $region9: #{regression_forward.1} parent=0 // pred_fallthru
    _
  // Predicated region
  $region10: #{regression_forward.1} parent=0 // pred_check
    _
  $region11: #{regression_forward.1} parent=0 // pred_check_branch
    %21 = sbr.rel (0) target = $region13
  $region12: #{regression_forward.1} parent=0 // pred_region
    _
  $region13: #{regression_forward.1} parent=0 // pred_fallthru
    _
  // Predicated region
  $region14: #{regression_forward.1} parent=0 // pred_check
    _
  $region15: #{regression_forward.1} parent=0 // pred_check_branch
    %23 = sbr.rel (0) target = $region17
  $region16: #{regression_forward.1} parent=0 // pred_region
    _
  $region17: #{regression_forward.1} parent=0 // pred_fallthru
    _
  // Predicated region
  $region18: #{regression_forward.1} parent=0 // pred_check
    _
  $region19: #{regression_forward.1} parent=0 // pred_check_branch
    %25 = sbr.rel (0) target = $region21
  $region20: #{regression_forward.1} parent=0 // pred_region
    _
  $region21: #{regression_forward.1} parent=0 // pred_fallthru
    _
  // Predicated region
  $region22: #{regression_forward.1} parent=0 // pred_check
    _
  $region23: #{regression_forward.1} parent=0 // pred_check_branch
    %27 = sbr.rel (0) target = $region25
  $region24: #{regression_forward.1} parent=0 // pred_region
    _
  $region25: #{regression_forward.1} parent=0 // pred_fallthru
    _
  // Predicated region
  $region26: #{regression_forward.1} parent=0 // pred_check
    _
  $region27: #{regression_forward.1} parent=0 // pred_check_branch
    %29 = sbr.rel (0) target = $region29
  $region28: #{regression_forward.1} parent=0 // pred_region
    _
  $region29: #{regression_forward.1} parent=0 // pred_fallthru
    _
  // Predicated region
  $region30: #{regression_forward.1} parent=0 // pred_check
    _
  $region31: #{regression_forward.1} parent=0 // pred_check_branch
    %31 = sbr.rel (0) target = $region33
  $region32: #{regression_forward.1} parent=0 // pred_region
    _
  $region33: #{regression_forward.1} parent=0 // pred_fallthru
    _
  // Predicated region
  $region34: #{regression_forward.1} parent=0 // pred_check
    _
  $region35: #{regression_forward.1} parent=0 // pred_check_branch
    %33 = sbr.rel (0) target = $region37
  $region36: #{regression_forward.1} parent=0 // pred_region
    _
  $region37: #{regression_forward.1} parent=0 // pred_fallthru
    _
  %v34 = vld [vmem:[%s0] sm:$0xff]
  %v35 = vld [vmem:[%s0 + $0x8] sm:$0x1f]
  %v36 = vld [vmem:[%s1] sm:$0xff]
  %v37 = vld [vmem:[%s1 + $0x8] sm:$0xff]
  %v38 = vld [vmem:[%s1 + $0x10] sm:$0xff]
  %v39 = vld [vmem:[%s1 + $0x18] sm:$0x3]
  %v40 = vld [vmem:[%s2] sm:$0xff]
  %v41 = vld [vmem:[%s2 + $0x8] sm:$0xff]
  %v42 = vld [vmem:[%s2 + $0x10] sm:$0xff]
  %v43 = vld [vmem:[%s2 + $0x18] sm:$0x3]
  %45 = vset.pattern.permute.xlu0 0
  %46 = vperm.xlu0 %45, %v40
  %v47 = vpop.permute.xlu0 %46
  %50 = vset.pattern.permute.xlu0 0
  %51 = vperm.xlu0 %50, %v41
  %v52 = vpop.permute.xlu0 %51
  %55 = vset.pattern.permute.xlu0 0
  %56 = vperm.xlu0 %55, %v42
  %v57 = vpop.permute.xlu0 %56
  %60 = vset.pattern.permute.xlu0 0
  %61 = vperm.xlu0 %60, %v43
  %v62 = vpop.permute.xlu0 %61
  %vm64 = vcmask 105472
  %v66 = vsel %vm64, %v36, 0
  %v69 = vsel %vm64, %v37, 0
  %v72 = vsel %vm64, %v38, 0
  %v75 = vsel %vm64, %v39, 0
  %vm77 = vcmask 1044480
  %v79 = vsel %vm77, %v35, 0
  %81 = vmatprep.subr.mxu0 0.0
  %82 = vmatpush1.msra.mxu0 %v34
  %83 = vmatprep.subr.mxu0 0.0
  %84 = vmatpush1.msra.mxu0 %v79
  %85 = vmatprep.subr.mxu0 0.0
  %86 = vmatpush1.msra.mxu0 0.0
  %87 = vmatprep.subr.mxu0 0.0
  %88 = vmatpush1.msra.mxu0 0.0
  %89 = vmatprep.subr.mxu0 0.0
  %90 = vmatpush1.msra.mxu0 0.0
  %91 = vmatprep.subr.mxu0 0.0
  %92 = vmatpush1.msra.mxu0 0.0
  %93 = vmatprep.subr.mxu0 0.0
  %94 = vmatpush1.msra.mxu0 0.0
  %95 = vmatprep.subr.mxu0 0.0
  %96 = vmatpush1.msra.mxu0 0.0
  %97 = vmatprep.subr.mxu0 0.0
  %98 = vmatpush1.msra.mxu0 0.0
  %99 = vmatprep.subr.mxu0 0.0
  %100 = vmatpush1.msra.mxu0 0.0
  %101 = vmatprep.subr.mxu0 0.0
  %102 = vmatpush1.msra.mxu0 0.0
  %103 = vmatprep.subr.mxu0 0.0
  %104 = vmatpush1.msra.mxu0 0.0
  %105 = vmatprep.subr.mxu0 0.0
  %106 = vmatpush1.msra.mxu0 0.0
  %107 = vmatprep.subr.mxu0 0.0
  %108 = vmatpush1.msra.mxu0 0.0
  %109 = vmatprep.subr.mxu0 0.0
  %110 = vmatpush1.msra.mxu0 0.0
  %111 = vmatprep.subr.mxu0 0.0
  %112 = vmatpush1.msra.mxu0 0.0
  %113 = vmatprep.subr.mxu0 0.0
  %114 = vmatpush1.msra.mxu0 0.0
  %115 = vmatprep.subr.mxu0 0.0
  %116 = vmatpush1.msra.mxu0 0.0
  %117 = vmatprep.subr.mxu0 0.0
  %118 = vmatpush1.msra.mxu0 0.0
  %119 = vmatprep.subr.mxu0 0.0
  %120 = vmatpush1.msra.mxu0 0.0
  %121 = vmatprep.subr.mxu0 0.0
  %122 = vmatpush1.msra.mxu0 0.0
  %123 = vmatprep.subr.mxu0 0.0
  %124 = vmatpush1.msra.mxu0 0.0
  %125 = vmatprep.subr.mxu0 0.0
  %126 = vmatpush1.msra.mxu0 0.0
  %127 = vmatprep.subr.mxu0 0.0
  %128 = vmatpush1.msra.mxu0 0.0
  %129 = vmatprep.subr.mxu0 0.0
  %130 = vmatpush1.msra.mxu0 0.0
  %131 = vmatprep.subr.mxu0 0.0
  %132 = vmatpush1.msra.mxu0 0.0
  %133 = vmatprep.subr.mxu0 0.0
  %134 = vmatpush1.msra.mxu0 0.0
  %135 = vmatprep.subr.mxu0 0.0
  %136 = vmatpush1.msra.mxu0 0.0
  %137 = vmatprep.subr.mxu0 0.0
  %138 = vmatpush1.msra.mxu0 0.0
  %139 = vmatprep.subr.mxu0 0.0
  %140 = vmatpush1.msra.mxu0 0.0
  %141 = vmatprep.subr.mxu0 0.0
  %142 = vmatpush1.msra.mxu0 0.0
  %143 = vmatprep.subr.mxu0 0.0
  %144 = vmatpush1.msra.mxu0 0.0
  %145 = vmatprep.mubr.f32.mxu0 0.0
  %146 = vmatmul.mubr.f32.gmra.mrb[0].mxu0 %v66
  %v147 = vpop.f32.mrb[0].mxu0
  %v148 = vadd.f32 %v47, %v147
  %v149 = vpop.f32.mrb[0].mxu0
  %150 = vmatprep.mubr.f32.mxu0 0.0
  %151 = vmatmul.mubr.f32.gmra.mrb[0].mxu0 %v69
  %v152 = vpop.f32.mrb[0].mxu0
  %v153 = vadd.f32 %v52, %v152
  %v154 = vpop.f32.mrb[0].mxu0
  %155 = vmatprep.mubr.f32.mxu0 0.0
  %156 = vmatmul.mubr.f32.gmra.mrb[0].mxu0 %v72
  %v157 = vpop.f32.mrb[0].mxu0
  %v158 = vadd.f32 %v57, %v157
  %v159 = vpop.f32.mrb[0].mxu0
  %160 = vmatprep.mubr.f32.mxu0 0.0
  %161 = vmatmul.mubr.f32.gmra.mrb[0].mxu0 %v75
  %v162 = vpop.f32.mrb[0].mxu0
  %v163 = vadd.f32 %v62, %v162
  %v164 = vpop.f32.mrb[0].mxu0
  %165 = vdwg.mxu0
  %v166 = vxor.u32 %v148, 2147483648
  %v167 = vxor.u32 %v153, 2147483648
  %v168 = vxor.u32 %v158, 2147483648
  %v169 = vxor.u32 %v163, 2147483648
  %v170 = vmul.f32 %v166, 1.442695
  %v171 = vpow.pop %v170
  %v172 = vmul.f32 %v167, 1.442695
  %v173 = vpow.pop %v172
  %v174 = vmul.f32 %v168, 1.442695
  %v175 = vpow.pop %v174
  %v176 = vmul.f32 %v169, 1.442695
  %v177 = vpow.pop %v176
  %v178 = vadd.f32 %v171, 1.0
  %v179 = vadd.f32 %v173, 1.0
  %v180 = vadd.f32 %v175, 1.0
  %v181 = vadd.f32 %v177, 1.0
  %v182 = vrcp.pop %v178
  %v183 = vmul.f32 1.0, %v182
  %v184 = vrcp.pop %v179
  %v185 = vmul.f32 1.0, %v184
  %v186 = vrcp.pop %v180
  %v187 = vmul.f32 1.0, %v186
  %v188 = vrcp.pop %v181
  %v189 = vmul.f32 1.0, %v188
  %v190 = vld [vmem:[%s3] sm:$0xff]
  %v191 = vld [vmem:[%s3 + $0x8] sm:$0xff]
  %v192 = vld [vmem:[%s3 + $0x10] sm:$0xff]
  %v193 = vld [vmem:[%s3 + $0x18] sm:$0x3]
  %v194 = vld [vmem:[%s4] sm:$0xff]
  %v195 = vld [vmem:[%s4 + $0x8] sm:$0xff]
  %v196 = vld [vmem:[%s4 + $0x10] sm:$0xff]
  %v197 = vld [vmem:[%s4 + $0x18] sm:$0x3]
  %199 = vset.pattern.permute.xlu0 0
  %200 = vperm.xlu0 %199, %v194
  %v201 = vpop.permute.xlu0 %200
  %204 = vset.pattern.permute.xlu0 0
  %205 = vperm.xlu0 %204, %v195
  %v206 = vpop.permute.xlu0 %205
  %209 = vset.pattern.permute.xlu0 0
  %210 = vperm.xlu0 %209, %v196
  %v211 = vpop.permute.xlu0 %210
  %214 = vset.pattern.permute.xlu0 0
  %215 = vperm.xlu0 %214, %v197
  %v216 = vpop.permute.xlu0 %215
  %vm218 = vcmask 211968
  %v220 = vsel %vm218, %v190, 0
  %v223 = vsel %vm218, %v191, 0
  %v226 = vsel %vm218, %v192, 0
  %v229 = vsel %vm218, %v193, 0
  %vm231 = vcmask 1041408
  %v233 = vsel %vm231, %v189, 0
  %235 = vmatprep.subr.mxu0 0.0
  %236 = vmatpush1.msra.mxu0 %v183
  %237 = vmatprep.subr.mxu0 0.0
  %238 = vmatpush1.msra.mxu0 %v185
  %239 = vmatprep.subr.mxu0 0.0
  %240 = vmatpush1.msra.mxu0 %v187
  %241 = vmatprep.subr.mxu0 0.0
  %242 = vmatpush1.msra.mxu0 %v233
  %243 = vmatprep.subr.mxu0 0.0
  %244 = vmatpush1.msra.mxu0 0.0
  %245 = vmatprep.subr.mxu0 0.0
  %246 = vmatpush1.msra.mxu0 0.0
  %247 = vmatprep.subr.mxu0 0.0
  %248 = vmatpush1.msra.mxu0 0.0
  %249 = vmatprep.subr.mxu0 0.0
  %250 = vmatpush1.msra.mxu0 0.0
  %251 = vmatprep.subr.mxu0 0.0
  %252 = vmatpush1.msra.mxu0 0.0
  %253 = vmatprep.subr.mxu0 0.0
  %254 = vmatpush1.msra.mxu0 0.0
  %255 = vmatprep.subr.mxu0 0.0
  %256 = vmatpush1.msra.mxu0 0.0
  %257 = vmatprep.subr.mxu0 0.0
  %258 = vmatpush1.msra.mxu0 0.0
  %259 = vmatprep.subr.mxu0 0.0
  %260 = vmatpush1.msra.mxu0 0.0
  %261 = vmatprep.subr.mxu0 0.0
  %262 = vmatpush1.msra.mxu0 0.0
  %263 = vmatprep.subr.mxu0 0.0
  %264 = vmatpush1.msra.mxu0 0.0
  %265 = vmatprep.subr.mxu0 0.0
  %266 = vmatpush1.msra.mxu0 0.0
  %267 = vmatprep.subr.mxu0 0.0
  %268 = vmatpush1.msra.mxu0 0.0
  %269 = vmatprep.subr.mxu0 0.0
  %270 = vmatpush1.msra.mxu0 0.0
  %271 = vmatprep.subr.mxu0 0.0
  %272 = vmatpush1.msra.mxu0 0.0
  %273 = vmatprep.subr.mxu0 0.0
  %274 = vmatpush1.msra.mxu0 0.0
  %275 = vmatprep.subr.mxu0 0.0
  %276 = vmatpush1.msra.mxu0 0.0
  %277 = vmatprep.subr.mxu0 0.0
  %278 = vmatpush1.msra.mxu0 0.0
  %279 = vmatprep.subr.mxu0 0.0
  %280 = vmatpush1.msra.mxu0 0.0
  %281 = vmatprep.subr.mxu0 0.0
  %282 = vmatpush1.msra.mxu0 0.0
  %283 = vmatprep.subr.mxu0 0.0
  %284 = vmatpush1.msra.mxu0 0.0
  %285 = vmatprep.subr.mxu0 0.0
  %286 = vmatpush1.msra.mxu0 0.0
  %287 = vmatprep.subr.mxu0 0.0
  %288 = vmatpush1.msra.mxu0 0.0
  %289 = vmatprep.subr.mxu0 0.0
  %290 = vmatpush1.msra.mxu0 0.0
  %291 = vmatprep.subr.mxu0 0.0
  %292 = vmatpush1.msra.mxu0 0.0
  %293 = vmatprep.subr.mxu0 0.0
  %294 = vmatpush1.msra.mxu0 0.0
  %295 = vmatprep.subr.mxu0 0.0
  %296 = vmatpush1.msra.mxu0 0.0
  %297 = vmatprep.subr.mxu0 0.0
  %298 = vmatpush1.msra.mxu0 0.0
  %299 = vmatprep.mubr.f32.mxu0 0.0
  %300 = vmatmul.mubr.f32.gmra.mrb[0].mxu0 %v220
  %v301 = vpop.f32.mrb[0].mxu0
  %v302 = vadd.f32 %v201, %v301
  %v303 = vpop.f32.mrb[0].mxu0
  %304 = vmatprep.mubr.f32.mxu0 0.0
  %305 = vmatmul.mubr.f32.gmra.mrb[0].mxu0 %v223
  %v306 = vpop.f32.mrb[0].mxu0
  %v307 = vadd.f32 %v206, %v306
  %v308 = vpop.f32.mrb[0].mxu0
  %309 = vmatprep.mubr.f32.mxu0 0.0
  %310 = vmatmul.mubr.f32.gmra.mrb[0].mxu0 %v226
  %v311 = vpop.f32.mrb[0].mxu0
  %v312 = vadd.f32 %v211, %v311
  %v313 = vpop.f32.mrb[0].mxu0
  %314 = vmatprep.mubr.f32.mxu0 0.0
  %315 = vmatmul.mubr.f32.gmra.mrb[0].mxu0 %v229
  %v316 = vpop.f32.mrb[0].mxu0
  %v317 = vadd.f32 %v216, %v316
  %v318 = vpop.f32.mrb[0].mxu0
  %319 = vdwg.mxu0
  %v320 = vxor.u32 %v302, 2147483648
  %v321 = vxor.u32 %v307, 2147483648
  %v322 = vxor.u32 %v312, 2147483648
  %v323 = vxor.u32 %v317, 2147483648
  %v324 = vmul.f32 %v320, 1.442695
  %v325 = vpow.pop %v324
  %v326 = vmul.f32 %v321, 1.442695
  %v327 = vpow.pop %v326
  %v328 = vmul.f32 %v322, 1.442695
  %v329 = vpow.pop %v328
  %v330 = vmul.f32 %v323, 1.442695
  %v331 = vpow.pop %v330
  %v332 = vadd.f32 %v325, 1.0
  %v333 = vadd.f32 %v327, 1.0
  %v334 = vadd.f32 %v329, 1.0
  %v335 = vadd.f32 %v331, 1.0
  %v336 = vrcp.pop %v332
  %v337 = vmul.f32 1.0, %v336
  %v338 = vrcp.pop %v333
  %v339 = vmul.f32 1.0, %v338
  %v340 = vrcp.pop %v334
  %v341 = vmul.f32 1.0, %v340
  %v342 = vrcp.pop %v335
  %v343 = vmul.f32 1.0, %v342
  %v344 = vld [vmem:[%s5] sm:$0xff]
  %v345 = vld [vmem:[%s5 + $0x8] sm:$0xff]
  %v346 = vld [vmem:[%s5 + $0x10] sm:$0xff]
  %v347 = vld [vmem:[%s5 + $0x18] sm:$0x3]
  %v348 = vld [vmem:[%s6] sm:$0xff]
  %v349 = vld [vmem:[%s6 + $0x8] sm:$0xff]
  %v350 = vld [vmem:[%s6 + $0x10] sm:$0xff]
  %v351 = vld [vmem:[%s6 + $0x18] sm:$0x3]
  %353 = vset.pattern.permute.xlu0 0
  %354 = vperm.xlu0 %353, %v348
  %v355 = vpop.permute.xlu0 %354
  %358 = vset.pattern.permute.xlu0 0
  %359 = vperm.xlu0 %358, %v349
  %v360 = vpop.permute.xlu0 %359
  %363 = vset.pattern.permute.xlu0 0
  %364 = vperm.xlu0 %363, %v350
  %v365 = vpop.permute.xlu0 %364
  %368 = vset.pattern.permute.xlu0 0
  %369 = vperm.xlu0 %368, %v351
  %v370 = vpop.permute.xlu0 %369
  %v373 = vsel %vm218, %v344, 0
  %v376 = vsel %vm218, %v345, 0
  %v379 = vsel %vm218, %v346, 0
  %v382 = vsel %vm218, %v347, 0
  %v385 = vsel %vm231, %v343, 0
  %387 = vmatprep.subr.mxu0 0.0
  %388 = vmatpush1.msra.mxu0 %v337
  %389 = vmatprep.subr.mxu0 0.0
  %390 = vmatpush1.msra.mxu0 %v339
  %391 = vmatprep.subr.mxu0 0.0
  %392 = vmatpush1.msra.mxu0 %v341
  %393 = vmatprep.subr.mxu0 0.0
  %394 = vmatpush1.msra.mxu0 %v385
  %395 = vmatprep.subr.mxu0 0.0
  %396 = vmatpush1.msra.mxu0 0.0
  %397 = vmatprep.subr.mxu0 0.0
  %398 = vmatpush1.msra.mxu0 0.0
  %399 = vmatprep.subr.mxu0 0.0
  %400 = vmatpush1.msra.mxu0 0.0
  %401 = vmatprep.subr.mxu0 0.0
  %402 = vmatpush1.msra.mxu0 0.0
  %403 = vmatprep.subr.mxu0 0.0
  %404 = vmatpush1.msra.mxu0 0.0
  %405 = vmatprep.subr.mxu0 0.0
  %406 = vmatpush1.msra.mxu0 0.0
  %407 = vmatprep.subr.mxu0 0.0
  %408 = vmatpush1.msra.mxu0 0.0
  %409 = vmatprep.subr.mxu0 0.0
  %410 = vmatpush1.msra.mxu0 0.0
  %411 = vmatprep.subr.mxu0 0.0
  %412 = vmatpush1.msra.mxu0 0.0
  %413 = vmatprep.subr.mxu0 0.0
  %414 = vmatpush1.msra.mxu0 0.0
  %415 = vmatprep.subr.mxu0 0.0
  %416 = vmatpush1.msra.mxu0 0.0
  %417 = vmatprep.subr.mxu0 0.0
  %418 = vmatpush1.msra.mxu0 0.0
  %419 = vmatprep.subr.mxu0 0.0
  %420 = vmatpush1.msra.mxu0 0.0
  %421 = vmatprep.subr.mxu0 0.0
  %422 = vmatpush1.msra.mxu0 0.0
  %423 = vmatprep.subr.mxu0 0.0
  %424 = vmatpush1.msra.mxu0 0.0
  %425 = vmatprep.subr.mxu0 0.0
  %426 = vmatpush1.msra.mxu0 0.0
  %427 = vmatprep.subr.mxu0 0.0
  %428 = vmatpush1.msra.mxu0 0.0
  %429 = vmatprep.subr.mxu0 0.0
  %430 = vmatpush1.msra.mxu0 0.0
  %431 = vmatprep.subr.mxu0 0.0
  %432 = vmatpush1.msra.mxu0 0.0
  %433 = vmatprep.subr.mxu0 0.0
  %434 = vmatpush1.msra.mxu0 0.0
  %435 = vmatprep.subr.mxu0 0.0
  %436 = vmatpush1.msra.mxu0 0.0
  %437 = vmatprep.subr.mxu0 0.0
  %438 = vmatpush1.msra.mxu0 0.0
  %439 = vmatprep.subr.mxu0 0.0
  %440 = vmatpush1.msra.mxu0 0.0
  %441 = vmatprep.subr.mxu0 0.0
  %442 = vmatpush1.msra.mxu0 0.0
  %443 = vmatprep.subr.mxu0 0.0
  %444 = vmatpush1.msra.mxu0 0.0
  %445 = vmatprep.subr.mxu0 0.0
  %446 = vmatpush1.msra.mxu0 0.0
  %447 = vmatprep.subr.mxu0 0.0
  %448 = vmatpush1.msra.mxu0 0.0
  %449 = vmatprep.subr.mxu0 0.0
  %450 = vmatpush1.msra.mxu0 0.0
  %451 = vmatprep.mubr.f32.mxu0 0.0
  %452 = vmatmul.mubr.f32.gmra.mrb[0].mxu0 %v373
  %v453 = vpop.f32.mrb[0].mxu0
  %v454 = vadd.f32 %v355, %v453
  %v455 = vpop.f32.mrb[0].mxu0
  %456 = vmatprep.mubr.f32.mxu0 0.0
  %457 = vmatmul.mubr.f32.gmra.mrb[0].mxu0 %v376
  %v458 = vpop.f32.mrb[0].mxu0
  %v459 = vadd.f32 %v360, %v458
  %v460 = vpop.f32.mrb[0].mxu0
  %461 = vmatprep.mubr.f32.mxu0 0.0
  %462 = vmatmul.mubr.f32.gmra.mrb[0].mxu0 %v379
  %v463 = vpop.f32.mrb[0].mxu0
  %v464 = vadd.f32 %v365, %v463
  %v465 = vpop.f32.mrb[0].mxu0
  %466 = vmatprep.mubr.f32.mxu0 0.0
  %467 = vmatmul.mubr.f32.gmra.mrb[0].mxu0 %v382
  %v468 = vpop.f32.mrb[0].mxu0
  %v469 = vadd.f32 %v370, %v468
  %v470 = vpop.f32.mrb[0].mxu0
  %471 = vdwg.mxu0
  %v472 = vxor.u32 %v454, 2147483648
  %v473 = vxor.u32 %v459, 2147483648
  %v474 = vxor.u32 %v464, 2147483648
  %v475 = vxor.u32 %v469, 2147483648
  %v476 = vmul.f32 %v472, 1.442695
  %v477 = vpow.pop %v476
  %v478 = vmul.f32 %v473, 1.442695
  %v479 = vpow.pop %v478
  %v480 = vmul.f32 %v474, 1.442695
  %v481 = vpow.pop %v480
  %v482 = vmul.f32 %v475, 1.442695
  %v483 = vpow.pop %v482
  %v484 = vadd.f32 %v477, 1.0
  %v485 = vadd.f32 %v479, 1.0
  %v486 = vadd.f32 %v481, 1.0
  %v487 = vadd.f32 %v483, 1.0
  %v488 = vrcp.pop %v484
  %v489 = vmul.f32 1.0, %v488
  %v490 = vrcp.pop %v485
  %v491 = vmul.f32 1.0, %v490
  %v492 = vrcp.pop %v486
  %v493 = vmul.f32 1.0, %v492
  %v494 = vrcp.pop %v487
  %v495 = vmul.f32 1.0, %v494
  %v496 = vld [vmem:[%s7] sm:$0x1]
  %v497 = vld [vmem:[#allocation2] sm:$0x1]
  %499 = vset.pattern.permute.xlu0 0
  %500 = vperm.xlu0 %499, %v497
  %v501 = vpop.permute.xlu0 %500
  %v503 = vlaneseq
  %v504 = vshrl.u32 %v503, 7
  %v505 = vsub.s32 0, %v504
  %v506 = vrot.slane %v501, %v505
  %v508 = vsel %vm218, %v496, 0
  %v511 = vsel %vm231, %v495, 0
  %513 = vmatprep.subr.mxu0 0.0
  %514 = vmatpush1.msra.mxu0 %v489
  %515 = vmatprep.subr.mxu0 0.0
  %516 = vmatpush1.msra.mxu0 %v491
  %517 = vmatprep.subr.mxu0 0.0
  %518 = vmatpush1.msra.mxu0 %v493
  %519 = vmatprep.subr.mxu0 0.0
  %520 = vmatpush1.msra.mxu0 %v511
  %521 = vmatprep.subr.mxu0 0.0
  %522 = vmatpush1.msra.mxu0 0.0
  %523 = vmatprep.subr.mxu0 0.0
  %524 = vmatpush1.msra.mxu0 0.0
  %525 = vmatprep.subr.mxu0 0.0
  %526 = vmatpush1.msra.mxu0 0.0
  %527 = vmatprep.subr.mxu0 0.0
  %528 = vmatpush1.msra.mxu0 0.0
  %529 = vmatprep.subr.mxu0 0.0
  %530 = vmatpush1.msra.mxu0 0.0
  %531 = vmatprep.subr.mxu0 0.0
  %532 = vmatpush1.msra.mxu0 0.0
  %533 = vmatprep.subr.mxu0 0.0
  %534 = vmatpush1.msra.mxu0 0.0
  %535 = vmatprep.subr.mxu0 0.0
  %536 = vmatpush1.msra.mxu0 0.0
  %537 = vmatprep.subr.mxu0 0.0
  %538 = vmatpush1.msra.mxu0 0.0
  %539 = vmatprep.subr.mxu0 0.0
  %540 = vmatpush1.msra.mxu0 0.0
  %541 = vmatprep.subr.mxu0 0.0
  %542 = vmatpush1.msra.mxu0 0.0
  %543 = vmatprep.subr.mxu0 0.0
  %544 = vmatpush1.msra.mxu0 0.0
  %545 = vmatprep.subr.mxu0 0.0
  %546 = vmatpush1.msra.mxu0 0.0
  %547 = vmatprep.subr.mxu0 0.0
  %548 = vmatpush1.msra.mxu0 0.0
  %549 = vmatprep.subr.mxu0 0.0
  %550 = vmatpush1.msra.mxu0 0.0
  %551 = vmatprep.subr.mxu0 0.0
  %552 = vmatpush1.msra.mxu0 0.0
  %553 = vmatprep.subr.mxu0 0.0
  %554 = vmatpush1.msra.mxu0 0.0
  %555 = vmatprep.subr.mxu0 0.0
  %556 = vmatpush1.msra.mxu0 0.0
  %557 = vmatprep.subr.mxu0 0.0
  %558 = vmatpush1.msra.mxu0 0.0
  %559 = vmatprep.subr.mxu0 0.0
  %560 = vmatpush1.msra.mxu0 0.0
  %561 = vmatprep.subr.mxu0 0.0
  %562 = vmatpush1.msra.mxu0 0.0
  %563 = vmatprep.subr.mxu0 0.0
  %564 = vmatpush1.msra.mxu0 0.0
  %565 = vmatprep.subr.mxu0 0.0
  %566 = vmatpush1.msra.mxu0 0.0
  %567 = vmatprep.subr.mxu0 0.0
  %568 = vmatpush1.msra.mxu0 0.0
  %569 = vmatprep.subr.mxu0 0.0
  %570 = vmatpush1.msra.mxu0 0.0
  %571 = vmatprep.subr.mxu0 0.0
  %572 = vmatpush1.msra.mxu0 0.0
  %573 = vmatprep.subr.mxu0 0.0
  %574 = vmatpush1.msra.mxu0 0.0
  %575 = vmatprep.subr.mxu0 0.0
  %576 = vmatpush1.msra.mxu0 0.0
  %577 = vmatprep.mubr.f32.mxu0 0.0
  %578 = vmatmul.mubr.f32.gmra.mrb[0].mxu0 %v508
  %v579 = vpop.f32.mrb[0].mxu0
  %v580 = vadd.f32 %v506, %v579
  %v581 = vpop.f32.mrb[0].mxu0
  %582 = vdwg.mxu0
  %583 = vst [vmem:[%s9] sm:$0x1] %v580
  // Predicated region
  $region38: #{regression_forward.1} parent=0 // pred_check
    _
  $region39: #{regression_forward.1} parent=0 // pred_check_branch
    %585 = sbr.rel (0) target = $region41
  $region40: #{regression_forward.1} parent=0 // pred_region
    _
  $region41: #{regression_forward.1} parent=0 // pred_fallthru
    _
  // Predicated region
  $region42: #{regression_forward.1} parent=0 // pred_check
    _
  $region43: #{regression_forward.1} parent=0 // pred_check_branch
    %587 = sbr.rel (0) target = $region45
  $region44: #{regression_forward.1} parent=0 // pred_region
    _
  $region45: #{regression_forward.1} parent=0 // pred_fallthru
    _

</llo_original>
